<compile_context>
chip_gen: v7x
topology: tpu7x:2x2x1
jax: 0.10.0
libtpu: 0.0.40
codegen_flags: <defaults>
</compile_context>

<pallas_src>
import functools

import jax
import jax.numpy as jnp
from jax.experimental import pallas as pl
from jax.experimental.pallas import tpu as pltpu


TILE = 128  # node tile for both dst (sublane) and src (lane) axes of the adjacency


def _round_up(x, m):
    return (x + m - 1) // m * m


def _pad2(a, rows, cols):
    pr, pc = rows - a.shape[0], cols - a.shape[1]
    if pr == 0 and pc == 0:
        return a
    return jnp.pad(a, ((0, pr), (0, pc)))


def sage_conv_kernel(adj_ref, h_ref, deg_inv_ref, w_ref, b_ref, *rest,
                     apply_relu_dropout: bool):
    if apply_relu_dropout:
        drop_ref, o_ref, acc_ref, cat_ref = rest
    else:
        o_ref, acc_ref, cat_ref = rest
        drop_ref = None

    i = pl.program_id(0)           # dst-node tile   (parallel)
    k = pl.program_id(1)           # src-node tile   (reduction, arbitrary)
    f_in = h_ref.shape[1]

    @pl.when(k == 0)
    def _():
        acc_ref[...] = jnp.zeros_like(acc_ref)

    # Neighbor sum: 0/1 adjacency tile @ src-feature tile (bf16 MXU, f32 accumulate).
    acc_ref[...] += jnp.dot(adj_ref[...], h_ref[...],
                            preferred_element_type=jnp.float32)

    # DGL blocks: dst nodes lead the src list, so with TM == TK the src tile k == i
    # *is* the dst tile -- capture it instead of DMA-ing the same rows twice.
    @pl.when(k == i)
    def _():
        cat_ref[:, f_in:] = h_ref[...]

    @pl.when(k == pl.num_programs(1) - 1)
    def _():
        # Mean aggregation = post-matmul 1/deg row scale (kept in f32 for accuracy).
        cat_ref[:, :f_in] = (acc_ref[...] * deg_inv_ref[...]).astype(cat_ref.dtype)
        # Fused projection: [h_neigh | h_dst] @ [[W_neigh], [W_self]] + b
        out = jnp.dot(cat_ref[...], w_ref[...],
                      preferred_element_type=jnp.float32) + b_ref[...]
        if apply_relu_dropout:
            out = jnp.maximum(out, 0.0) * drop_ref[...]   # relu + dropout, f32 VPU path
        o_ref[...] = out.astype(o_ref.dtype)


def sage_conv(adj01, deg_inv, h, w_stack, b, drop_scale, *,
              tile: int, apply_relu_dropout: bool):
    """One SAGEConv("mean") layer. All arrays already padded to tile/128 multiples."""
    n_dst_p, n_src_p = adj01.shape
    f_in_p = h.shape[1]
    f_out_p = w_stack.shape[1]
    assert n_dst_p % tile == 0 and n_src_p % tile == 0
    assert n_dst_p <= n_src_p          # DGL invariant: dst nodes are a prefix of src
    grid = (n_dst_p // tile, n_src_p // tile)

    in_specs = [
        pl.BlockSpec((tile, tile), lambda i, k: (i, k)),           # adjacency tile
        pl.BlockSpec((tile, f_in_p), lambda i, k: (k, 0)),         # src feature tile
        pl.BlockSpec((tile, 1), lambda i, k: (i, 0)),              # 1/deg for dst rows
        pl.BlockSpec((2 * f_in_p, f_out_p), lambda i, k: (0, 0)),  # [W_neigh; W_self]
        pl.BlockSpec((1, f_out_p), lambda i, k: (0, 0)),           # bias
    ]
    args = [adj01, h, deg_inv, w_stack, b]
    if apply_relu_dropout:
        in_specs.append(pl.BlockSpec((tile, f_out_p), lambda i, k: (i, 0)))
        args.append(drop_scale)

    kernel = functools.partial(sage_conv_kernel,
                               apply_relu_dropout=apply_relu_dropout)
    return pl.pallas_call(
        kernel,
        out_shape=jax.ShapeDtypeStruct((n_dst_p, f_out_p), jnp.bfloat16),
        grid_spec=pltpu.PrefetchScalarGridSpec(
            num_scalar_prefetch=0,
            grid=grid,
            in_specs=in_specs,
            out_specs=pl.BlockSpec((tile, f_out_p), lambda i, k: (i, 0)),
            scratch_shapes=[
                pltpu.VMEM((tile, f_in_p), jnp.float32),       # neighbor-sum accumulator
                pltpu.VMEM((tile, 2 * f_in_p), jnp.bfloat16),  # [h_neigh | h_dst] buffer
            ],
        ),
        compiler_params=pltpu.CompilerParams(
            dimension_semantics=("parallel", "arbitrary")),
    )(*args)


def graphsage_forward(blocks, x, params, *, dropout_rate, training, dropout_key,
                      tile=TILE):
    """blocks: list of dense 0/1 adjacencies [n_dst_l, n_src_l] (unnormalized)."""
    n_layers = len(params)
    h = x
    for l, (adj, (w_neigh, w_self, b)) in enumerate(zip(blocks, params)):
        n_dst, n_src = adj.shape
        f_in, f_out = w_neigh.shape
        n_dst_p, n_src_p = _round_up(n_dst, tile), _round_up(n_src, tile)
        f_in_p, f_out_p = _round_up(f_in, 128), _round_up(f_out, 128)

        h_p = _pad2(h.astype(jnp.bfloat16), n_src_p, f_in_p)
        adj_p = _pad2(adj, n_dst_p, n_src_p).astype(jnp.bfloat16)   # 0/1: exact in bf16
        deg = jnp.sum(adj, axis=1)
        deg_inv = jnp.where(deg > 0, 1.0 / deg, 0.0).astype(jnp.float32)
        deg_inv_p = _pad2(deg_inv[:, None], n_dst_p, 1)

        w_stack = jnp.concatenate(
            [_pad2(w_neigh, f_in_p, f_out_p), _pad2(w_self, f_in_p, f_out_p)],
            axis=0).astype(jnp.bfloat16)
        b_p = _pad2(b.reshape(1, -1), 1, f_out_p).astype(jnp.float32)

        last = (l == n_layers - 1)
        drop_scale = None
        if not last:
            rate = dropout_rate if training else 0.0
            dropout_key, kl = jax.random.split(dropout_key)
            if rate <= 0.0:
                drop_scale = jnp.ones((n_dst_p, f_out_p), jnp.float32)
            elif rate >= 1.0:                       # avoid 1/(1-p) overflow/inf
                drop_scale = jnp.zeros((n_dst_p, f_out_p), jnp.float32)
            else:
                keep = jax.random.bernoulli(kl, 1.0 - rate, (n_dst_p, f_out_p))
                drop_scale = keep.astype(jnp.float32) / (1.0 - rate)

        h = sage_conv(adj_p, deg_inv_p, h_p, w_stack, b_p, drop_scale,
                      tile=tile, apply_relu_dropout=not last)

    n_dst_final = blocks[-1].shape[0]
    f_out_final = params[-1][0].shape[1]
    return h[:n_dst_final, :f_out_final].astype(jnp.float32)


def init_sage_params(key, in_feats, n_hidden, n_classes, n_layers):
    dims = [in_feats] + [n_hidden] * (n_layers - 1) + [n_classes]
    params = []
    for l in range(n_layers):
        f_in, f_out = dims[l], dims[l + 1]
        key, k1, k2 = jax.random.split(key, 3)
        lim = (6.0 / (f_in + f_out)) ** 0.5        # xavier-uniform, as in DGL SAGEConv
        w_neigh = jax.random.uniform(k1, (f_in, f_out), jnp.float32, -lim, lim)
        w_self = jax.random.uniform(k2, (f_in, f_out), jnp.float32, -lim, lim)
        b = jnp.zeros((1, f_out), jnp.float32)
        params.append((w_neigh, w_self, b))
    return params


def make_block_adjacency(key, n_dst, n_src):
    """Dense 0/1 adjacency (dst x src) with a guaranteed self edge (unnormalized)."""
    a = (jax.random.uniform(key, (n_dst, n_src)) < 0.3).astype(jnp.float32)
    eye = jnp.zeros((n_dst, n_src)).at[jnp.arange(n_dst), jnp.arange(n_dst)].set(1.0)
    return jnp.maximum(a, eye)                     # DGL blocks: dst nodes lead src list


if __name__ == "__main__":
    key = jax.random.PRNGKey(0)

    in_feats, n_hidden, n_classes, n_layers = 16, 32, 8, 3
    dropout_rate = 0.5
    node_counts = [64, 32, 16, 8]   # src of layer l = node_counts[l], dst = node_counts[l+1]

    key, kx = jax.random.split(key)
    x = jax.random.normal(kx, (node_counts[0], in_feats), jnp.float32)

    blocks = []
    for l in range(n_layers):
        key, ka = jax.random.split(key)
        blocks.append(make_block_adjacency(ka, node_counts[l + 1], node_counts[l]))

    key, kp = jax.random.split(key)
    params = init_sage_params(kp, in_feats, n_hidden, n_classes, n_layers)

    key, kd = jax.random.split(key)
    out = graphsage_forward(blocks, x, params, dropout_rate=dropout_rate,
                            training=True, dropout_key=kd)
    out = jax.block_until_ready(out)
    assert out.shape == (node_counts[-1], n_classes)
    print("KERNEL_OK")
</pallas_src>

<mosaic_0001>
module attributes {stable_mosaic.version = 11 : i64} {
  func.func @sage_conv_kernel(%arg0: i32, %arg1: i32, %arg2: memref<128x128xbf16, #tpu.memory_space<vmem>>, %arg3: memref<128x128xbf16, #tpu.memory_space<vmem>>, %arg4: memref<128x1xf32, #tpu.memory_space<vmem>>, %arg5: memref<256x128xbf16, #tpu.memory_space<vmem>>, %arg6: memref<1x128xf32, #tpu.memory_space<vmem>>, %arg7: memref<128x128xf32, #tpu.memory_space<vmem>>, %arg8: memref<128x128xbf16, #tpu.memory_space<vmem>>, %arg9: memref<128x128xf32, #tpu.memory_space<vmem>>, %arg10: memref<128x256xbf16, #tpu.memory_space<vmem>>) attributes {dimension_semantics = [#tpu.dimension_semantics<parallel>, #tpu.dimension_semantics<arbitrary>], iteration_bounds = array<i64: 1, 1>, scalar_prefetch = 0 : i64, scratch_operands = 2 : i64, tpu.core_type = #tpu.core_type<tc>, window_params = [{transform_indices = @transform_0, window_bounds = array<i64: 128, 128>}, {transform_indices = @transform_1, window_bounds = array<i64: 128, 128>}, {transform_indices = @transform_2, window_bounds = array<i64: 128, 1>}, {pipeline_mode = #tpu.pipeline_mode<synchronous>, transform_indices = @transform_3, window_bounds = array<i64: 256, 128>}, {pipeline_mode = #tpu.pipeline_mode<synchronous>, transform_indices = @transform_4, window_bounds = array<i64: 1, 128>}, {transform_indices = @transform_5, window_bounds = array<i64: 128, 128>}, {transform_indices = @transform_6, window_bounds = array<i64: 128, 128>}]} {
    %c0_i32 = arith.constant 0 : i32
    %0 = arith.cmpi eq, %arg1, %c0_i32 : i32
    %1 = arith.extui %0 : i1 to i32
    %c0_i32_0 = arith.constant 0 : i32
    %2 = arith.cmpi ne, %1, %c0_i32_0 : i32
    scf.if %2 {
      %cst_11 = arith.constant 0.000000e+00 : f32
      %15 = vector.broadcast %cst_11 : f32 to vector<128x128xf32>
      %c0_12 = arith.constant 0 : index
      %c0_13 = arith.constant 0 : index
      %16 = vector.load %arg9[%c0_12, %c0_13] : memref<128x128xf32, #tpu.memory_space<vmem>>, vector<128x128xf32>
      tpu.vector_store %arg9[%c0_12, %c0_13], %15 {strides = array<i32>} : memref<128x128xf32, #tpu.memory_space<vmem>>, vector<128x128xf32>,
    } else {
    }
    %c0 = arith.constant 0 : index
    %c0_1 = arith.constant 0 : index
    %3 = vector.load %arg9[%c0, %c0_1] : memref<128x128xf32, #tpu.memory_space<vmem>>, vector<128x128xf32>
    %c0_2 = arith.constant 0 : index
    %c0_3 = arith.constant 0 : index
    %4 = vector.load %arg2[%c0_2, %c0_3] : memref<128x128xbf16, #tpu.memory_space<vmem>>, vector<128x128xbf16>
    %c0_4 = arith.constant 0 : index
    %c0_5 = arith.constant 0 : index
    %5 = vector.load %arg3[%c0_4, %c0_5] : memref<128x128xbf16, #tpu.memory_space<vmem>>, vector<128x128xbf16>
    %cst = arith.constant dense<0.000000e+00> : vector<128x128xf32>
    %6 = tpu.matmul %4, %5, %cst {dimension_numbers = #tpu.dot_dimension_numbers<[1], [0], [0], [1], [0, 0, 1, 1], [], []>} : vector<128x128xbf16>, vector<128x128xbf16>, vector<128x128xf32> -> vector<128x128xf32>
    %7 = arith.addf %3, %6 : vector<128x128xf32>
    %c0_6 = arith.constant 0 : index
    %c0_7 = arith.constant 0 : index
    %8 = vector.load %arg9[%c0_6, %c0_7] : memref<128x128xf32, #tpu.memory_space<vmem>>, vector<128x128xf32>
    tpu.vector_store %arg9[%c0_6, %c0_7], %7 {strides = array<i32>} : memref<128x128xf32, #tpu.memory_space<vmem>>, vector<128x128xf32>,
    %9 = arith.cmpi eq, %arg1, %arg0 : i32
    %10 = arith.extui %9 : i1 to i32
    %c0_i32_8 = arith.constant 0 : i32
    %11 = arith.cmpi ne, %10, %c0_i32_8 : i32
    scf.if %11 {
      %c0_11 = arith.constant 0 : index
      %c0_12 = arith.constant 0 : index
      %15 = vector.load %arg3[%c0_11, %c0_12] : memref<128x128xbf16, #tpu.memory_space<vmem>>, vector<128x128xbf16>
      %c0_13 = arith.constant 0 : index
      %c128 = arith.constant 128 : index
      %16 = vector.load %arg10[%c0_13, %c128] : memref<128x256xbf16, #tpu.memory_space<vmem>>, vector<128x128xbf16>
      tpu.vector_store %arg10[%c0_13, %c128], %15 {strides = array<i32>} : memref<128x256xbf16, #tpu.memory_space<vmem>>, vector<128x128xbf16>,
    } else {
    }
    %c0_i32_9 = arith.constant 0 : i32
    %12 = arith.cmpi eq, %arg1, %c0_i32_9 : i32
    %13 = arith.extui %12 : i1 to i32
    %c0_i32_10 = arith.constant 0 : i32
    %14 = arith.cmpi ne, %13, %c0_i32_10 : i32
    scf.if %14 {
      %c0_11 = arith.constant 0 : index
      %c0_12 = arith.constant 0 : index
      %15 = vector.load %arg9[%c0_11, %c0_12] : memref<128x128xf32, #tpu.memory_space<vmem>>, vector<128x128xf32>
      %c0_13 = arith.constant 0 : index
      %c0_14 = arith.constant 0 : index
      %16 = vector.load %arg4[%c0_13, %c0_14] : memref<128x1xf32, #tpu.memory_space<vmem>>, vector<128x1xf32>
      %17 = vector.broadcast %16 : vector<128x1xf32> to vector<128x128xf32>
      %18 = arith.mulf %15, %17 : vector<128x128xf32>
      %19 = arith.truncf %18 : vector<128x128xf32> to vector<128x128xbf16>
      %c0_15 = arith.constant 0 : index
      %c0_16 = arith.constant 0 : index
      %20 = vector.load %arg10[%c0_15, %c0_16] : memref<128x256xbf16, #tpu.memory_space<vmem>>, vector<128x128xbf16>
      tpu.vector_store %arg10[%c0_15, %c0_16], %19 {strides = array<i32>} : memref<128x256xbf16, #tpu.memory_space<vmem>>, vector<128x128xbf16>,
      %c0_17 = arith.constant 0 : index
      %c0_18 = arith.constant 0 : index
      %21 = vector.load %arg10[%c0_17, %c0_18] : memref<128x256xbf16, #tpu.memory_space<vmem>>, vector<128x256xbf16>
      %c0_19 = arith.constant 0 : index
      %c0_20 = arith.constant 0 : index
      %22 = vector.load %arg5[%c0_19, %c0_20] : memref<256x128xbf16, #tpu.memory_space<vmem>>, vector<256x128xbf16>
      %cst_21 = arith.constant dense<0.000000e+00> : vector<128x128xf32>
      %23 = tpu.matmul %21, %22, %cst_21 {dimension_numbers = #tpu.dot_dimension_numbers<[1], [0], [0], [1], [0, 0, 1, 1], [], []>} : vector<128x256xbf16>, vector<256x128xbf16>, vector<128x128xf32> -> vector<128x128xf32>
      %c0_22 = arith.constant 0 : index
      %c0_23 = arith.constant 0 : index
      %24 = vector.load %arg6[%c0_22, %c0_23] : memref<1x128xf32, #tpu.memory_space<vmem>>, vector<1x128xf32>
      %25 = vector.broadcast %24 : vector<1x128xf32> to vector<128x128xf32>
      %26 = arith.addf %23, %25 : vector<128x128xf32>
      %cst_24 = arith.constant 0.000000e+00 : f32
      %27 = vector.broadcast %cst_24 : f32 to vector<128x128xf32>
      %28 = arith.maximumf %26, %27 : vector<128x128xf32>
      %c0_25 = arith.constant 0 : index
      %c0_26 = arith.constant 0 : index
      %29 = vector.load %arg7[%c0_25, %c0_26] : memref<128x128xf32, #tpu.memory_space<vmem>>, vector<128x128xf32>
      %30 = arith.mulf %28, %29 : vector<128x128xf32>
      %31 = arith.truncf %30 : vector<128x128xf32> to vector<128x128xbf16>
      %c0_27 = arith.constant 0 : index
      %c0_28 = arith.constant 0 : index
      %32 = vector.load %arg8[%c0_27, %c0_28] : memref<128x128xbf16, #tpu.memory_space<vmem>>, vector<128x128xbf16>
      tpu.vector_store %arg8[%c0_27, %c0_28], %31 {strides = array<i32>} : memref<128x128xbf16, #tpu.memory_space<vmem>>, vector<128x128xbf16>,
    } else {
    }
    return
  }
  func.func @transform_0(%arg0: i32, %arg1: i32) -> (i32, i32) {
    %c0_i32 = arith.constant 0 : i32
    return %arg0, %arg1 : i32, i32
  }
  func.func @transform_1(%arg0: i32, %arg1: i32) -> (i32, i32) {
    %c0_i32 = arith.constant 0 : i32
    %c0_i32_0 = arith.constant 0 : i32
    return %arg1, %c0_i32 : i32, i32
  }
  func.func @transform_2(%arg0: i32, %arg1: i32) -> (i32, i32) {
    %c0_i32 = arith.constant 0 : i32
    %c0_i32_0 = arith.constant 0 : i32
    return %arg0, %c0_i32 : i32, i32
  }
  func.func @transform_3(%arg0: i32, %arg1: i32) -> (i32, i32) {
    %c0_i32 = arith.constant 0 : i32
    %c0_i32_0 = arith.constant 0 : i32
    %c0_i32_1 = arith.constant 0 : i32
    return %c0_i32, %c0_i32_0 : i32, i32
  }
  func.func @transform_4(%arg0: i32, %arg1: i32) -> (i32, i32) {
    %c0_i32 = arith.constant 0 : i32
    %c0_i32_0 = arith.constant 0 : i32
    %c0_i32_1 = arith.constant 0 : i32
    return %c0_i32, %c0_i32_0 : i32, i32
  }
  func.func @transform_5(%arg0: i32, %arg1: i32) -> (i32, i32) {
    %c0_i32 = arith.constant 0 : i32
    %c0_i32_0 = arith.constant 0 : i32
    return %arg0, %c0_i32 : i32, i32
  }
  func.func @transform_6(%arg0: i32, %arg1: i32) -> (i32, i32) {
    %c0_i32 = arith.constant 0 : i32
    %c0_i32_0 = arith.constant 0 : i32
    return %arg0, %c0_i32 : i32, i32
  }
}

</mosaic_0001>

<llo_original>
// kernel: tpu_custom_call.1
$region0: #{tpu_custom_call.1}
  #allocation0 [shape = 'u32[]', space=smem, size = 0x4, offset = 0x4, fixed_abs, tag = 'smem constant byte address 0x4 - core index']
  #allocation1 [shape = 'u32[144,128]{1,0:T(1,128)}', space=vmem, size = 0x12000, scoped, tag = 'internal scratch']
  #allocation2 [shape = 'f32[128,128]{1,0:T(8,128)}', space=vmem, size = 0x10000, scoped, tag = 'scratch operand']
  #allocation3 [shape = 'bf16[128,256]{1,0:T(16,128)(2,1)}', space=vmem, size = 0x10000, scoped, tag = 'scratch operand']
  %s0 = inlined_call_operand.hbm [shape: bf16[128,128], index: 0, kind: input, shape index: {}]
  %s1 = inlined_call_operand.hbm [shape: bf16[128,128], index: 1, kind: input, shape index: {}]
  %s2 = inlined_call_operand.vmem [shape: f32[128,1], index: 2, kind: input, shape index: {}]
  %s3 = inlined_call_operand.vmem [shape: bf16[256,128], index: 3, kind: input, shape index: {}]
  %s4 = inlined_call_operand.vmem [shape: f32[1,128], index: 4, kind: input, shape index: {}]
  %s5 = inlined_call_operand.hbm [shape: f32[128,128], index: 5, kind: input, shape index: {}]
  %s6 = inlined_call_operand.hbm [shape: bf16[128,128], index: 6, kind: output, shape index: {}]
  %s7 = sld [smem:[#allocation0]]
  $region58: #{tpu_custom_call.1} parent=0
    _
  %s9 = ssub.s32 1, %s7
  %s10 = scalar_select 0, %s9, %s7
  $region1: #{tpu_custom_call.1} parent=0
    #allocation4 [shape = 'u8[32768]{0}', space=vmem, size = 0x8000, scoped, tag = 'input window, operand 0, single buffered']
    #allocation5 [shape = 's32[1]{0}', space=sflag, size = 0x4, scoped, tag = 'scoped memory for tpu_custom_call.1']
    #allocation6 [shape = 's32[1]{0}', space=sflag, size = 0x4, scoped, tag = 'scoped memory for tpu_custom_call.1']
    #allocation7 [shape = 'u8[32768]{0}', space=vmem, size = 0x8000, scoped, tag = 'input window, operand 1, single buffered']
    #allocation8 [shape = 's32[1]{0}', space=sflag, size = 0x4, scoped, tag = 'scoped memory for tpu_custom_call.1']
    #allocation9 [shape = 'u8[65536]{0}', space=vmem, size = 0x10000, scoped, tag = 'input window, operand 5, single buffered']
    #allocation10 [shape = 'u8[32768]{0}', space=vmem, size = 0x8000, scoped, tag = 'output window, operand 0, single buffered']
    %11 = vsyncpa [#allocation5], 0
    %12 = vsyncpa [#allocation8], 0
    %13 = vsyncpa [#allocation6], 0
    // Predicated region
    $region2: #{tpu_custom_call.1} parent=1 // pred_check
      _
    $region3: #{tpu_custom_call.1} parent=1 // pred_check_branch
      %15 = sbr.rel (0) target = $region5
    $region4: #{tpu_custom_call.1} parent=1 // pred_region
      %s17 = ssub.s32 1024, 1024
      %18 = vsyncadd [#allocation5], %s17
      %s19 = sshll.u32 [#allocation4], 4
      %s20 = int_to_ptr.vmem [resolvable:$true] %s19
      %25 = dma.hbm_to_vmem [thread:$0]  %s0, 1024, %s20, [#allocation5], 64, 64, 4
    $region5: #{tpu_custom_call.1} parent=1 // pred_fallthru
      _
    // Predicated region
    $region6: #{tpu_custom_call.1} parent=1 // pred_check
      _
    $region7: #{tpu_custom_call.1} parent=1 // pred_check_branch
      %27 = sbr.rel (0) target = $region9
    $region8: #{tpu_custom_call.1} parent=1 // pred_region
      %s29 = ssub.s32 1024, 1024
      %30 = vsyncadd [#allocation8], %s29
      %s31 = sshll.u32 [#allocation7], 4
      %s32 = int_to_ptr.vmem [resolvable:$true] %s31
      %37 = dma.hbm_to_vmem [thread:$0]  %s1, 1024, %s32, [#allocation8], 64, 64, 4
    $region9: #{tpu_custom_call.1} parent=1 // pred_fallthru
      _
    // Predicated region
    $region10: #{tpu_custom_call.1} parent=1 // pred_check
      _
    $region11: #{tpu_custom_call.1} parent=1 // pred_check_branch
      %39 = sbr.rel (0) target = $region13
    $region12: #{tpu_custom_call.1} parent=1 // pred_region
      _
    $region13: #{tpu_custom_call.1} parent=1 // pred_fallthru
      _
    // Predicated region
    $region14: #{tpu_custom_call.1} parent=1 // pred_check
      _
    $region15: #{tpu_custom_call.1} parent=1 // pred_check_branch
      %41 = sbr.rel (0) target = $region17
    $region16: #{tpu_custom_call.1} parent=1 // pred_region
      _
    $region17: #{tpu_custom_call.1} parent=1 // pred_fallthru
      _
    // Predicated region
    $region18: #{tpu_custom_call.1} parent=1 // pred_check
      _
    $region19: #{tpu_custom_call.1} parent=1 // pred_check_branch
      %43 = sbr.rel (0) target = $region21
    $region20: #{tpu_custom_call.1} parent=1 // pred_region
      _
    $region21: #{tpu_custom_call.1} parent=1 // pred_fallthru
      _
    // Predicated region
    $region22: #{tpu_custom_call.1} parent=1 // pred_check
      _
    $region23: #{tpu_custom_call.1} parent=1 // pred_check_branch
      %45 = sbr.rel (0) target = $region25
    $region24: #{tpu_custom_call.1} parent=1 // pred_region
      %s47 = ssub.s32 2048, 2048
      %48 = vsyncadd [#allocation8], %s47
      %s49 = sshll.u32 [#allocation9], 4
      %s50 = int_to_ptr.vmem [resolvable:$true] %s49
      %55 = dma.hbm_to_vmem [thread:$0]  %s5, 2048, %s50, [#allocation8], 128, 128, 8
    $region25: #{tpu_custom_call.1} parent=1 // pred_fallthru
      _
    // Predicated region
    $region26: #{tpu_custom_call.1} parent=1 // pred_check
      _
    $region27: #{tpu_custom_call.1} parent=1 // pred_check_branch
      %57 = sbr.rel (0) target = $region29
    $region28: #{tpu_custom_call.1} parent=1 // pred_region
      %58 = dma.done [#allocation5], 1024
    $region29: #{tpu_custom_call.1} parent=1 // pred_fallthru
      _
    // Predicated region
    $region30: #{tpu_custom_call.1} parent=1 // pred_check
      _
    $region31: #{tpu_custom_call.1} parent=1 // pred_check_branch
      %60 = sbr.rel (0) target = $region33
    $region32: #{tpu_custom_call.1} parent=1 // pred_region
      %61 = dma.done [#allocation8], 1024
    $region33: #{tpu_custom_call.1} parent=1 // pred_fallthru
      _
    // Predicated region
    $region34: #{tpu_custom_call.1} parent=1 // pred_check
      _
    $region35: #{tpu_custom_call.1} parent=1 // pred_check_branch
      %63 = sbr.rel (0) target = $region37
    $region36: #{tpu_custom_call.1} parent=1 // pred_region
      %64 = dma.done [#allocation8], 2048
    $region37: #{tpu_custom_call.1} parent=1 // pred_fallthru
      _
    %p66 = scmp.eq.s32.totalorder 0, 0
    // Predicated region
    $region38: #{tpu_custom_call.1} parent=1 // pred_check
      %p67 = pneg %p66
    $region39: #{tpu_custom_call.1} parent=1 // pred_check_branch
      %69 = sbr.rel (%p67) target = $region41
    $region40: #{tpu_custom_call.1} parent=1 // pred_region
      %70 = vst [vmem:[#allocation2] sm:$0xff] 0.0
      %71 = vst [vmem:[#allocation2 + $0x8] sm:$0xff] 0.0
      %72 = vst [vmem:[#allocation2 + $0x10] sm:$0xff] 0.0
      %73 = vst [vmem:[#allocation2 + $0x18] sm:$0xff] 0.0
      %74 = vst [vmem:[#allocation2 + $0x20] sm:$0xff] 0.0
      %75 = vst [vmem:[#allocation2 + $0x28] sm:$0xff] 0.0
      %76 = vst [vmem:[#allocation2 + $0x30] sm:$0xff] 0.0
      %77 = vst [vmem:[#allocation2 + $0x38] sm:$0xff] 0.0
      %78 = vst [vmem:[#allocation2 + $0x40] sm:$0xff] 0.0
      %79 = vst [vmem:[#allocation2 + $0x48] sm:$0xff] 0.0
      %80 = vst [vmem:[#allocation2 + $0x50] sm:$0xff] 0.0
      %81 = vst [vmem:[#allocation2 + $0x58] sm:$0xff] 0.0
      %82 = vst [vmem:[#allocation2 + $0x60] sm:$0xff] 0.0
      %83 = vst [vmem:[#allocation2 + $0x68] sm:$0xff] 0.0
      %84 = vst [vmem:[#allocation2 + $0x70] sm:$0xff] 0.0
      %85 = vst [vmem:[#allocation2 + $0x78] sm:$0xff] 0.0
    $region41: #{tpu_custom_call.1} parent=1 // pred_fallthru
      _
    %v86 = vld [vmem:[#allocation2] sm:$0xff]
    %v87 = vld [vmem:[#allocation2 + $0x8] sm:$0xff]
    %v88 = vld [vmem:[#allocation2 + $0x10] sm:$0xff]
    %v89 = vld [vmem:[#allocation2 + $0x18] sm:$0xff]
    %v90 = vld [vmem:[#allocation2 + $0x20] sm:$0xff]
    %v91 = vld [vmem:[#allocation2 + $0x28] sm:$0xff]
    %v92 = vld [vmem:[#allocation2 + $0x30] sm:$0xff]
    %v93 = vld [vmem:[#allocation2 + $0x38] sm:$0xff]
    %v94 = vld [vmem:[#allocation2 + $0x40] sm:$0xff]
    %v95 = vld [vmem:[#allocation2 + $0x48] sm:$0xff]
    %v96 = vld [vmem:[#allocation2 + $0x50] sm:$0xff]
    %v97 = vld [vmem:[#allocation2 + $0x58] sm:$0xff]
    %v98 = vld [vmem:[#allocation2 + $0x60] sm:$0xff]
    %v99 = vld [vmem:[#allocation2 + $0x68] sm:$0xff]
    %v100 = vld [vmem:[#allocation2 + $0x70] sm:$0xff]
    %v101 = vld [vmem:[#allocation2 + $0x78] sm:$0xff]
    %v102 = vld [vmem:[#allocation4] sm:$0xf]
    %v103 = vld [vmem:[#allocation4 + $0x4] sm:$0xf]
    %v104 = vld [vmem:[#allocation4 + $0x8] sm:$0xf]
    %v105 = vld [vmem:[#allocation4 + $0xc] sm:$0xf]
    %v106 = vld [vmem:[#allocation4 + $0x10] sm:$0xf]
    %v107 = vld [vmem:[#allocation4 + $0x14] sm:$0xf]
    %v108 = vld [vmem:[#allocation4 + $0x18] sm:$0xf]
    %v109 = vld [vmem:[#allocation4 + $0x1c] sm:$0xf]
    %v110 = vld [vmem:[#allocation4 + $0x20] sm:$0xf]
    %v111 = vld [vmem:[#allocation4 + $0x24] sm:$0xf]
    %v112 = vld [vmem:[#allocation4 + $0x28] sm:$0xf]
    %v113 = vld [vmem:[#allocation4 + $0x2c] sm:$0xf]
    %v114 = vld [vmem:[#allocation4 + $0x30] sm:$0xf]
    %v115 = vld [vmem:[#allocation4 + $0x34] sm:$0xf]
    %v116 = vld [vmem:[#allocation4 + $0x38] sm:$0xf]
    %v117 = vld [vmem:[#allocation4 + $0x3c] sm:$0xf]
    %v118 = vld [vmem:[#allocation7] sm:$0xf]
    %v119 = vld [vmem:[#allocation7 + $0x4] sm:$0xf]
    %v120 = vld [vmem:[#allocation7 + $0x8] sm:$0xf]
    %v121 = vld [vmem:[#allocation7 + $0xc] sm:$0xf]
    %v122 = vld [vmem:[#allocation7 + $0x10] sm:$0xf]
    %v123 = vld [vmem:[#allocation7 + $0x14] sm:$0xf]
    %v124 = vld [vmem:[#allocation7 + $0x18] sm:$0xf]
    %v125 = vld [vmem:[#allocation7 + $0x1c] sm:$0xf]
    %v126 = vld [vmem:[#allocation7 + $0x20] sm:$0xf]
    %v127 = vld [vmem:[#allocation7 + $0x24] sm:$0xf]
    %v128 = vld [vmem:[#allocation7 + $0x28] sm:$0xf]
    %v129 = vld [vmem:[#allocation7 + $0x2c] sm:$0xf]
    %v130 = vld [vmem:[#allocation7 + $0x30] sm:$0xf]
    %v131 = vld [vmem:[#allocation7 + $0x34] sm:$0xf]
    %v132 = vld [vmem:[#allocation7 + $0x38] sm:$0xf]
    %v133 = vld [vmem:[#allocation7 + $0x3c] sm:$0xf]
    %v150 = vunpack.c.l.b16 %v102
    %v151 = vunpack.c.l.b16 %v103
    %v152 = vunpack.c.l.b16 %v104
    %v153 = vunpack.c.l.b16 %v105
    %v154 = vunpack.c.l.b16 %v106
    %v155 = vunpack.c.l.b16 %v107
    %v156 = vunpack.c.l.b16 %v108
    %v157 = vunpack.c.l.b16 %v109
    %v158 = vunpack.c.l.b16 %v110
    %v159 = vunpack.c.l.b16 %v111
    %v160 = vunpack.c.l.b16 %v112
    %v161 = vunpack.c.l.b16 %v113
    %v162 = vunpack.c.l.b16 %v114
    %v163 = vunpack.c.l.b16 %v115
    %v164 = vunpack.c.l.b16 %v116
    %v165 = vunpack.c.l.b16 %v117
    %v166 = vpack.c.b16 %v151, %v150
    %v167 = vpack.c.b16 %v153, %v152
    %v168 = vpack.c.b16 %v155, %v154
    %v169 = vpack.c.b16 %v157, %v156
    %v170 = vpack.c.b16 %v159, %v158
    %v171 = vpack.c.b16 %v161, %v160
    %v172 = vpack.c.b16 %v163, %v162
    %v173 = vpack.c.b16 %v165, %v164
    %v198 = vunpack.c.l.b16 %v118
    %v199 = vunpack.c.l.b16 %v119
    %v200 = vunpack.c.l.b16 %v120
    %v201 = vunpack.c.l.b16 %v121
    %v202 = vunpack.c.l.b16 %v122
    %v203 = vunpack.c.l.b16 %v123
    %v204 = vunpack.c.l.b16 %v124
    %v205 = vunpack.c.l.b16 %v125
    %v206 = vunpack.c.l.b16 %v126
    %v207 = vunpack.c.l.b16 %v127
    %v208 = vunpack.c.l.b16 %v128
    %v209 = vunpack.c.l.b16 %v129
    %v210 = vunpack.c.l.b16 %v130
    %v211 = vunpack.c.l.b16 %v131
    %v212 = vunpack.c.l.b16 %v132
    %v213 = vunpack.c.l.b16 %v133
    %v214 = vpack.c.b16 %v199, %v198
    %v215 = vpack.c.b16 %v201, %v200
    %v216 = vpack.c.b16 %v203, %v202
    %v217 = vpack.c.b16 %v205, %v204
    %v218 = vpack.c.b16 %v207, %v206
    %v219 = vpack.c.b16 %v209, %v208
    %v220 = vpack.c.b16 %v211, %v210
    %v221 = vpack.c.b16 %v213, %v212
    %230 = vmatprep.subr.bf16.mxu0 0
    %231 = vmatpush1.bf16.msra.mxu0 %v214
    %232 = vmatprep.subr.bf16.mxu0 0
    %233 = vmatpush1.bf16.msra.mxu0 %v215
    %234 = vmatprep.subr.bf16.mxu0 0
    %235 = vmatpush1.bf16.msra.mxu0 %v216
    %236 = vmatprep.subr.bf16.mxu0 0
    %237 = vmatpush1.bf16.msra.mxu0 %v217
    %238 = vmatprep.subr.bf16.mxu0 0
    %239 = vmatpush1.bf16.msra.mxu0 %v218
    %240 = vmatprep.subr.bf16.mxu0 0
    %241 = vmatpush1.bf16.msra.mxu0 %v219
    %242 = vmatprep.subr.bf16.mxu0 0
    %243 = vmatpush1.bf16.msra.mxu0 %v220
    %244 = vmatprep.subr.bf16.mxu0 0
    %245 = vmatpush1.bf16.msra.mxu0 %v221
    %246 = vmatprep.subr.bf16.mxu0 0
    %247 = vmatpush1.bf16.msra.mxu0 0
    %248 = vmatprep.subr.bf16.mxu0 0
    %249 = vmatpush1.bf16.msra.mxu0 0
    %250 = vmatprep.subr.bf16.mxu0 0
    %251 = vmatpush1.bf16.msra.mxu0 0
    %252 = vmatprep.subr.bf16.mxu0 0
    %253 = vmatpush1.bf16.msra.mxu0 0
    %254 = vmatprep.subr.bf16.mxu0 0
    %255 = vmatpush1.bf16.msra.mxu0 0
    %256 = vmatprep.subr.bf16.mxu0 0
    %257 = vmatpush1.bf16.msra.mxu0 0
    %258 = vmatprep.subr.bf16.mxu0 0
    %259 = vmatpush1.bf16.msra.mxu0 0
    %260 = vmatprep.subr.bf16.mxu0 0
    %261 = vmatpush1.bf16.msra.mxu0 0
    %262 = vmatprep.mubr.bf16.mxu0 0
    %263 = vmatmul.mubr.bf16.gmra.mrb[0].mxu0 %v166
    %v264 = vpop.f32.mrb[0].mxu0
    %v265 = vadd.f32 0.0, %v264
    %v266 = vpop.f32.mrb[0].mxu0
    %v267 = vpop.f32.mrb[0].mxu0
    %v268 = vadd.f32 0.0, %v267
    %v269 = vpop.f32.mrb[0].mxu0
    %270 = vmatprep.mubr.bf16.mxu0 0
    %271 = vmatmul.mubr.bf16.gmra.mrb[0].mxu0 %v167
    %v272 = vpop.f32.mrb[0].mxu0
    %v273 = vadd.f32 0.0, %v272
    %v274 = vpop.f32.mrb[0].mxu0
    %v275 = vpop.f32.mrb[0].mxu0
    %v276 = vadd.f32 0.0, %v275
    %v277 = vpop.f32.mrb[0].mxu0
    %278 = vmatprep.mubr.bf16.mxu0 0
    %279 = vmatmul.mubr.bf16.gmra.mrb[0].mxu0 %v168
    %v280 = vpop.f32.mrb[0].mxu0
    %v281 = vadd.f32 0.0, %v280
    %v282 = vpop.f32.mrb[0].mxu0
    %v283 = vpop.f32.mrb[0].mxu0
    %v284 = vadd.f32 0.0, %v283
    %v285 = vpop.f32.mrb[0].mxu0
    %286 = vmatprep.mubr.bf16.mxu0 0
    %287 = vmatmul.mubr.bf16.gmra.mrb[0].mxu0 %v169
    %v288 = vpop.f32.mrb[0].mxu0
    %v289 = vadd.f32 0.0, %v288
    %v290 = vpop.f32.mrb[0].mxu0
    %v291 = vpop.f32.mrb[0].mxu0
    %v292 = vadd.f32 0.0, %v291
    %v293 = vpop.f32.mrb[0].mxu0
    %294 = vmatprep.mubr.bf16.mxu0 0
    %295 = vmatmul.mubr.bf16.gmra.mrb[0].mxu0 %v170
    %v296 = vpop.f32.mrb[0].mxu0
    %v297 = vadd.f32 0.0, %v296
    %v298 = vpop.f32.mrb[0].mxu0
    %v299 = vpop.f32.mrb[0].mxu0
    %v300 = vadd.f32 0.0, %v299
    %v301 = vpop.f32.mrb[0].mxu0
    %302 = vmatprep.mubr.bf16.mxu0 0
    %303 = vmatmul.mubr.bf16.gmra.mrb[0].mxu0 %v171
    %v304 = vpop.f32.mrb[0].mxu0
    %v305 = vadd.f32 0.0, %v304
    %v306 = vpop.f32.mrb[0].mxu0
    %v307 = vpop.f32.mrb[0].mxu0
    %v308 = vadd.f32 0.0, %v307
    %v309 = vpop.f32.mrb[0].mxu0
    %310 = vmatprep.mubr.bf16.mxu0 0
    %311 = vmatmul.mubr.bf16.gmra.mrb[0].mxu0 %v172
    %v312 = vpop.f32.mrb[0].mxu0
    %v313 = vadd.f32 0.0, %v312
    %v314 = vpop.f32.mrb[0].mxu0
    %v315 = vpop.f32.mrb[0].mxu0
    %v316 = vadd.f32 0.0, %v315
    %v317 = vpop.f32.mrb[0].mxu0
    %318 = vmatprep.mubr.bf16.mxu0 0
    %319 = vmatmul.mubr.bf16.gmra.mrb[0].mxu0 %v173
    %v320 = vpop.f32.mrb[0].mxu0
    %v321 = vadd.f32 0.0, %v320
    %v322 = vpop.f32.mrb[0].mxu0
    %v323 = vpop.f32.mrb[0].mxu0
    %v324 = vadd.f32 0.0, %v323
    %v325 = vpop.f32.mrb[0].mxu0
    %326 = vdwg.mxu0
    %v327 = vadd.f32 %v86, %v265
    %v328 = vadd.f32 %v87, %v268
    %v329 = vadd.f32 %v88, %v273
    %v330 = vadd.f32 %v89, %v276
    %v331 = vadd.f32 %v90, %v281
    %v332 = vadd.f32 %v91, %v284
    %v333 = vadd.f32 %v92, %v289
    %v334 = vadd.f32 %v93, %v292
    %v335 = vadd.f32 %v94, %v297
    %v336 = vadd.f32 %v95, %v300
    %v337 = vadd.f32 %v96, %v305
    %v338 = vadd.f32 %v97, %v308
    %v339 = vadd.f32 %v98, %v313
    %v340 = vadd.f32 %v99, %v316
    %v341 = vadd.f32 %v100, %v321
    %v342 = vadd.f32 %v101, %v324
    %343 = vst [vmem:[#allocation2] sm:$0xff] %v327
    %344 = vst [vmem:[#allocation2 + $0x8] sm:$0xff] %v328
    %345 = vst [vmem:[#allocation2 + $0x10] sm:$0xff] %v329
    %346 = vst [vmem:[#allocation2 + $0x18] sm:$0xff] %v330
    %347 = vst [vmem:[#allocation2 + $0x20] sm:$0xff] %v331
    %348 = vst [vmem:[#allocation2 + $0x28] sm:$0xff] %v332
    %349 = vst [vmem:[#allocation2 + $0x30] sm:$0xff] %v333
    %350 = vst [vmem:[#allocation2 + $0x38] sm:$0xff] %v334
    %351 = vst [vmem:[#allocation2 + $0x40] sm:$0xff] %v335
    %352 = vst [vmem:[#allocation2 + $0x48] sm:$0xff] %v336
    %353 = vst [vmem:[#allocation2 + $0x50] sm:$0xff] %v337
    %354 = vst [vmem:[#allocation2 + $0x58] sm:$0xff] %v338
    %355 = vst [vmem:[#allocation2 + $0x60] sm:$0xff] %v339
    %356 = vst [vmem:[#allocation2 + $0x68] sm:$0xff] %v340
    %357 = vst [vmem:[#allocation2 + $0x70] sm:$0xff] %v341
    %358 = vst [vmem:[#allocation2 + $0x78] sm:$0xff] %v342
    %p359 = scmp.eq.s32.totalorder 0, 0
    // Predicated region
    $region42: #{tpu_custom_call.1} parent=1 // pred_check
      %p360 = pneg %p359
    $region43: #{tpu_custom_call.1} parent=1 // pred_check_branch
      %362 = sbr.rel (%p360) target = $region45
    $region44: #{tpu_custom_call.1} parent=1 // pred_region
      %v363 = vld [vmem:[#allocation7] sm:$0xf]
      %v364 = vld [vmem:[#allocation7 + $0x4] sm:$0xf]
      %v365 = vld [vmem:[#allocation7 + $0x8] sm:$0xf]
      %v366 = vld [vmem:[#allocation7 + $0xc] sm:$0xf]
      %v367 = vld [vmem:[#allocation7 + $0x10] sm:$0xf]
      %v368 = vld [vmem:[#allocation7 + $0x14] sm:$0xf]
      %v369 = vld [vmem:[#allocation7 + $0x18] sm:$0xf]
      %v370 = vld [vmem:[#allocation7 + $0x1c] sm:$0xf]
      %v371 = vld [vmem:[#allocation7 + $0x20] sm:$0xf]
      %v372 = vld [vmem:[#allocation7 + $0x24] sm:$0xf]
      %v373 = vld [vmem:[#allocation7 + $0x28] sm:$0xf]
      %v374 = vld [vmem:[#allocation7 + $0x2c] sm:$0xf]
      %v375 = vld [vmem:[#allocation7 + $0x30] sm:$0xf]
      %v376 = vld [vmem:[#allocation7 + $0x34] sm:$0xf]
      %v377 = vld [vmem:[#allocation7 + $0x38] sm:$0xf]
      %v378 = vld [vmem:[#allocation7 + $0x3c] sm:$0xf]
      %v395 = vunpack.c.l.b16 %v363
      %v396 = vunpack.c.l.b16 %v364
      %v397 = vunpack.c.l.b16 %v365
      %v398 = vunpack.c.l.b16 %v366
      %v399 = vunpack.c.l.b16 %v367
      %v400 = vunpack.c.l.b16 %v368
      %v401 = vunpack.c.l.b16 %v369
      %v402 = vunpack.c.l.b16 %v370
      %v403 = vunpack.c.l.b16 %v371
      %v404 = vunpack.c.l.b16 %v372
      %v405 = vunpack.c.l.b16 %v373
      %v406 = vunpack.c.l.b16 %v374
      %v407 = vunpack.c.l.b16 %v375
      %v408 = vunpack.c.l.b16 %v376
      %v409 = vunpack.c.l.b16 %v377
      %v410 = vunpack.c.l.b16 %v378
      %v411 = vpack.c.b16 %v396, %v395
      %v412 = vpack.c.b16 %v398, %v397
      %v413 = vpack.c.b16 %v400, %v399
      %v414 = vpack.c.b16 %v402, %v401
      %v415 = vpack.c.b16 %v404, %v403
      %v416 = vpack.c.b16 %v406, %v405
      %v417 = vpack.c.b16 %v408, %v407
      %v418 = vpack.c.b16 %v410, %v409
      %427 = vst [vmem:[#allocation3 + $0x8] sm:$0xff] %v411
      %428 = vst [vmem:[#allocation3 + $0x18] sm:$0xff] %v412
      %429 = vst [vmem:[#allocation3 + $0x28] sm:$0xff] %v413
      %430 = vst [vmem:[#allocation3 + $0x38] sm:$0xff] %v414
      %431 = vst [vmem:[#allocation3 + $0x48] sm:$0xff] %v415
      %432 = vst [vmem:[#allocation3 + $0x58] sm:$0xff] %v416
      %433 = vst [vmem:[#allocation3 + $0x68] sm:$0xff] %v417
      %434 = vst [vmem:[#allocation3 + $0x78] sm:$0xff] %v418
    $region45: #{tpu_custom_call.1} parent=1 // pred_fallthru
      _
    // Predicated region
    $region46: #{tpu_custom_call.1} parent=1 // pred_check
      %p435 = pneg %p66
    $region47: #{tpu_custom_call.1} parent=1 // pred_check_branch
      %437 = sbr.rel (%p435) target = $region49
    $region48: #{tpu_custom_call.1} parent=1 // pred_region
      %v438 = vld [vmem:[#allocation2] sm:$0xff]
      %v439 = vld [vmem:[#allocation2 + $0x8] sm:$0xff]
      %v440 = vld [vmem:[#allocation2 + $0x10] sm:$0xff]
      %v441 = vld [vmem:[#allocation2 + $0x18] sm:$0xff]
      %v442 = vld [vmem:[#allocation2 + $0x20] sm:$0xff]
      %v443 = vld [vmem:[#allocation2 + $0x28] sm:$0xff]
      %v444 = vld [vmem:[#allocation2 + $0x30] sm:$0xff]
      %v445 = vld [vmem:[#allocation2 + $0x38] sm:$0xff]
      %v446 = vld [vmem:[#allocation2 + $0x40] sm:$0xff]
      %v447 = vld [vmem:[#allocation2 + $0x48] sm:$0xff]
      %v448 = vld [vmem:[#allocation2 + $0x50] sm:$0xff]
      %v449 = vld [vmem:[#allocation2 + $0x58] sm:$0xff]
      %v450 = vld [vmem:[#allocation2 + $0x60] sm:$0xff]
      %v451 = vld [vmem:[#allocation2 + $0x68] sm:$0xff]
      %v452 = vld [vmem:[#allocation2 + $0x70] sm:$0xff]
      %v453 = vld [vmem:[#allocation2 + $0x78] sm:$0xff]
      %v454 = vld [vmem:[%s2] sm:$0xff]
      %v455 = vld [vmem:[%s2 + $0x8] sm:$0xff]
      %v456 = vld [vmem:[%s2 + $0x10] sm:$0xff]
      %v457 = vld [vmem:[%s2 + $0x18] sm:$0xff]
      %v458 = vld [vmem:[%s2 + $0x20] sm:$0xff]
      %v459 = vld [vmem:[%s2 + $0x28] sm:$0xff]
      %v460 = vld [vmem:[%s2 + $0x30] sm:$0xff]
      %v461 = vld [vmem:[%s2 + $0x38] sm:$0xff]
      %v462 = vld [vmem:[%s2 + $0x40] sm:$0xff]
      %v463 = vld [vmem:[%s2 + $0x48] sm:$0xff]
      %v464 = vld [vmem:[%s2 + $0x50] sm:$0xff]
      %v465 = vld [vmem:[%s2 + $0x58] sm:$0xff]
      %v466 = vld [vmem:[%s2 + $0x60] sm:$0xff]
      %v467 = vld [vmem:[%s2 + $0x68] sm:$0xff]
      %v468 = vld [vmem:[%s2 + $0x70] sm:$0xff]
      %v469 = vld [vmem:[%s2 + $0x78] sm:$0xff]
      %471 = vset.pattern.permute.xlu0 0
      %472 = vperm.xlu0 %471, %v454
      %v473 = vpop.permute.xlu0 %472
      %476 = vset.pattern.permute.xlu0 0
      %477 = vperm.xlu0 %476, %v455
      %v478 = vpop.permute.xlu0 %477
      %481 = vset.pattern.permute.xlu0 0
      %482 = vperm.xlu0 %481, %v456
      %v483 = vpop.permute.xlu0 %482
      %486 = vset.pattern.permute.xlu0 0
      %487 = vperm.xlu0 %486, %v457
      %v488 = vpop.permute.xlu0 %487
      %491 = vset.pattern.permute.xlu0 0
      %492 = vperm.xlu0 %491, %v458
      %v493 = vpop.permute.xlu0 %492
      %496 = vset.pattern.permute.xlu0 0
      %497 = vperm.xlu0 %496, %v459
      %v498 = vpop.permute.xlu0 %497
      %501 = vset.pattern.permute.xlu0 0
      %502 = vperm.xlu0 %501, %v460
      %v503 = vpop.permute.xlu0 %502
      %506 = vset.pattern.permute.xlu0 0
      %507 = vperm.xlu0 %506, %v461
      %v508 = vpop.permute.xlu0 %507
      %511 = vset.pattern.permute.xlu0 0
      %512 = vperm.xlu0 %511, %v462
      %v513 = vpop.permute.xlu0 %512
      %516 = vset.pattern.permute.xlu0 0
      %517 = vperm.xlu0 %516, %v463
      %v518 = vpop.permute.xlu0 %517
      %521 = vset.pattern.permute.xlu0 0
      %522 = vperm.xlu0 %521, %v464
      %v523 = vpop.permute.xlu0 %522
      %526 = vset.pattern.permute.xlu0 0
      %527 = vperm.xlu0 %526, %v465
      %v528 = vpop.permute.xlu0 %527
      %531 = vset.pattern.permute.xlu0 0
      %532 = vperm.xlu0 %531, %v466
      %v533 = vpop.permute.xlu0 %532
      %536 = vset.pattern.permute.xlu0 0
      %537 = vperm.xlu0 %536, %v467
      %v538 = vpop.permute.xlu0 %537
      %541 = vset.pattern.permute.xlu0 0
      %542 = vperm.xlu0 %541, %v468
      %v543 = vpop.permute.xlu0 %542
      %546 = vset.pattern.permute.xlu0 0
      %547 = vperm.xlu0 %546, %v469
      %v548 = vpop.permute.xlu0 %547
      %v550 = vmul.f32 %v438, %v473
      %v551 = vmul.f32 %v439, %v478
      %v552 = vmul.f32 %v440, %v483
      %v553 = vmul.f32 %v441, %v488
      %v554 = vmul.f32 %v442, %v493
      %v555 = vmul.f32 %v443, %v498
      %v556 = vmul.f32 %v444, %v503
      %v557 = vmul.f32 %v445, %v508
      %v558 = vmul.f32 %v446, %v513
      %v559 = vmul.f32 %v447, %v518
      %v560 = vmul.f32 %v448, %v523
      %v561 = vmul.f32 %v449, %v528
      %v562 = vmul.f32 %v450, %v533
      %v563 = vmul.f32 %v451, %v538
      %v564 = vmul.f32 %v452, %v543
      %v565 = vmul.f32 %v453, %v548
      %v566 = vpack.c.bf16 %v551, %v550
      %v567 = vpack.c.bf16 %v553, %v552
      %v568 = vpack.c.bf16 %v555, %v554
      %v569 = vpack.c.bf16 %v557, %v556
      %v570 = vpack.c.bf16 %v559, %v558
      %v571 = vpack.c.bf16 %v561, %v560
      %v572 = vpack.c.bf16 %v563, %v562
      %v573 = vpack.c.bf16 %v565, %v564
      %574 = vst [vmem:[#allocation3] sm:$0xff] %v566
      %575 = vst [vmem:[#allocation3 + $0x10] sm:$0xff] %v567
      %576 = vst [vmem:[#allocation3 + $0x20] sm:$0xff] %v568
      %577 = vst [vmem:[#allocation3 + $0x30] sm:$0xff] %v569
      %578 = vst [vmem:[#allocation3 + $0x40] sm:$0xff] %v570
      %579 = vst [vmem:[#allocation3 + $0x50] sm:$0xff] %v571
      %580 = vst [vmem:[#allocation3 + $0x60] sm:$0xff] %v572
      %581 = vst [vmem:[#allocation3 + $0x70] sm:$0xff] %v573
      %v582 = vld [vmem:[#allocation3] sm:$0xff]
      %v583 = vld [vmem:[#allocation3 + $0x8] sm:$0xff]
      %v584 = vld [vmem:[#allocation3 + $0x10] sm:$0xff]
      %v585 = vld [vmem:[#allocation3 + $0x18] sm:$0xff]
      %v586 = vld [vmem:[#allocation3 + $0x20] sm:$0xff]
      %v587 = vld [vmem:[#allocation3 + $0x28] sm:$0xff]
      %v588 = vld [vmem:[#allocation3 + $0x30] sm:$0xff]
      %v589 = vld [vmem:[#allocation3 + $0x38] sm:$0xff]
      %v590 = vld [vmem:[#allocation3 + $0x40] sm:$0xff]
      %v591 = vld [vmem:[#allocation3 + $0x48] sm:$0xff]
      %v592 = vld [vmem:[#allocation3 + $0x50] sm:$0xff]
      %v593 = vld [vmem:[#allocation3 + $0x58] sm:$0xff]
      %v594 = vld [vmem:[#allocation3 + $0x60] sm:$0xff]
      %v595 = vld [vmem:[#allocation3 + $0x68] sm:$0xff]
      %v596 = vld [vmem:[#allocation3 + $0x70] sm:$0xff]
      %v597 = vld [vmem:[#allocation3 + $0x78] sm:$0xff]
      %v598 = vld [vmem:[%s3] sm:$0xf]
      %v599 = vld [vmem:[%s3 + $0x4] sm:$0xf]
      %v600 = vld [vmem:[%s3 + $0x8] sm:$0xf]
      %v601 = vld [vmem:[%s3 + $0xc] sm:$0xf]
      %v602 = vld [vmem:[%s3 + $0x10] sm:$0xf]
      %v603 = vld [vmem:[%s3 + $0x14] sm:$0xf]
      %v604 = vld [vmem:[%s3 + $0x18] sm:$0xf]
      %v605 = vld [vmem:[%s3 + $0x1c] sm:$0xf]
      %v606 = vld [vmem:[%s3 + $0x20] sm:$0xf]
      %v607 = vld [vmem:[%s3 + $0x24] sm:$0xf]
      %v608 = vld [vmem:[%s3 + $0x28] sm:$0xf]
      %v609 = vld [vmem:[%s3 + $0x2c] sm:$0xf]
      %v610 = vld [vmem:[%s3 + $0x30] sm:$0xf]
      %v611 = vld [vmem:[%s3 + $0x34] sm:$0xf]
      %v612 = vld [vmem:[%s3 + $0x38] sm:$0xf]
      %v613 = vld [vmem:[%s3 + $0x3c] sm:$0xf]
      %v614 = vld [vmem:[%s3 + $0x40] sm:$0xf]
      %v615 = vld [vmem:[%s3 + $0x44] sm:$0xf]
      %v616 = vld [vmem:[%s3 + $0x48] sm:$0xf]
      %v617 = vld [vmem:[%s3 + $0x4c] sm:$0xf]
      %v618 = vld [vmem:[%s3 + $0x50] sm:$0xf]
      %v619 = vld [vmem:[%s3 + $0x54] sm:$0xf]
      %v620 = vld [vmem:[%s3 + $0x58] sm:$0xf]
      %v621 = vld [vmem:[%s3 + $0x5c] sm:$0xf]
      %v622 = vld [vmem:[%s3 + $0x60] sm:$0xf]
      %v623 = vld [vmem:[%s3 + $0x64] sm:$0xf]
      %v624 = vld [vmem:[%s3 + $0x68] sm:$0xf]
      %v625 = vld [vmem:[%s3 + $0x6c] sm:$0xf]
      %v626 = vld [vmem:[%s3 + $0x70] sm:$0xf]
      %v627 = vld [vmem:[%s3 + $0x74] sm:$0xf]
      %v628 = vld [vmem:[%s3 + $0x78] sm:$0xf]
      %v629 = vld [vmem:[%s3 + $0x7c] sm:$0xf]
      %v630 = vld [vmem:[%s4] sm:$0x1]
      %v632 = vlaneseq
      %v633 = vshrl.u32 %v632, 7
      %v634 = vsub.s32 0, %v633
      %v635 = vrot.slane %v630, %v634
      %v669 = vunpack.c.l.b16 %v598
      %v670 = vunpack.c.l.b16 %v599
      %v671 = vunpack.c.l.b16 %v600
      %v672 = vunpack.c.l.b16 %v601
      %v673 = vunpack.c.l.b16 %v602
      %v674 = vunpack.c.l.b16 %v603
      %v675 = vunpack.c.l.b16 %v604
      %v676 = vunpack.c.l.b16 %v605
      %v677 = vunpack.c.l.b16 %v606
      %v678 = vunpack.c.l.b16 %v607
      %v679 = vunpack.c.l.b16 %v608
      %v680 = vunpack.c.l.b16 %v609
      %v681 = vunpack.c.l.b16 %v610
      %v682 = vunpack.c.l.b16 %v611
      %v683 = vunpack.c.l.b16 %v612
      %v684 = vunpack.c.l.b16 %v613
      %v685 = vunpack.c.l.b16 %v614
      %v686 = vunpack.c.l.b16 %v615
      %v687 = vunpack.c.l.b16 %v616
      %v688 = vunpack.c.l.b16 %v617
      %v689 = vunpack.c.l.b16 %v618
      %v690 = vunpack.c.l.b16 %v619
      %v691 = vunpack.c.l.b16 %v620
      %v692 = vunpack.c.l.b16 %v621
      %v693 = vunpack.c.l.b16 %v622
      %v694 = vunpack.c.l.b16 %v623
      %v695 = vunpack.c.l.b16 %v624
      %v696 = vunpack.c.l.b16 %v625
      %v697 = vunpack.c.l.b16 %v626
      %v698 = vunpack.c.l.b16 %v627
      %v699 = vunpack.c.l.b16 %v628
      %v700 = vunpack.c.l.b16 %v629
      %v701 = vpack.c.b16 %v670, %v669
      %v702 = vpack.c.b16 %v672, %v671
      %v703 = vpack.c.b16 %v674, %v673
      %v704 = vpack.c.b16 %v676, %v675
      %v705 = vpack.c.b16 %v678, %v677
      %v706 = vpack.c.b16 %v680, %v679
      %v707 = vpack.c.b16 %v682, %v681
      %v708 = vpack.c.b16 %v684, %v683
      %v709 = vpack.c.b16 %v686, %v685
      %v710 = vpack.c.b16 %v688, %v687
      %v711 = vpack.c.b16 %v690, %v689
      %v712 = vpack.c.b16 %v692, %v691
      %v713 = vpack.c.b16 %v694, %v693
      %v714 = vpack.c.b16 %v696, %v695
      %v715 = vpack.c.b16 %v698, %v697
      %v716 = vpack.c.b16 %v700, %v699
      %733 = vmatprep.subr.bf16.mxu0 0
      %734 = vmatpush1.bf16.msra.mxu0 %v701
      %735 = vmatprep.subr.bf16.mxu0 0
      %736 = vmatpush1.bf16.msra.mxu0 %v702
      %737 = vmatprep.subr.bf16.mxu0 0
      %738 = vmatpush1.bf16.msra.mxu0 %v703
      %739 = vmatprep.subr.bf16.mxu0 0
      %740 = vmatpush1.bf16.msra.mxu0 %v704
      %741 = vmatprep.subr.bf16.mxu0 0
      %742 = vmatpush1.bf16.msra.mxu0 %v705
      %743 = vmatprep.subr.bf16.mxu0 0
      %744 = vmatpush1.bf16.msra.mxu0 %v706
      %745 = vmatprep.subr.bf16.mxu0 0
      %746 = vmatpush1.bf16.msra.mxu0 %v707
      %747 = vmatprep.subr.bf16.mxu0 0
      %748 = vmatpush1.bf16.msra.mxu0 %v708
      %749 = vmatprep.subr.bf16.mxu0 0
      %750 = vmatpush1.bf16.msra.mxu0 %v709
      %751 = vmatprep.subr.bf16.mxu0 0
      %752 = vmatpush1.bf16.msra.mxu0 %v710
      %753 = vmatprep.subr.bf16.mxu0 0
      %754 = vmatpush1.bf16.msra.mxu0 %v711
      %755 = vmatprep.subr.bf16.mxu0 0
      %756 = vmatpush1.bf16.msra.mxu0 %v712
      %757 = vmatprep.subr.bf16.mxu0 0
      %758 = vmatpush1.bf16.msra.mxu0 %v713
      %759 = vmatprep.subr.bf16.mxu0 0
      %760 = vmatpush1.bf16.msra.mxu0 %v714
      %761 = vmatprep.subr.bf16.mxu0 0
      %762 = vmatpush1.bf16.msra.mxu0 %v715
      %763 = vmatprep.subr.bf16.mxu0 0
      %764 = vmatpush1.bf16.msra.mxu0 %v716
      %765 = vmatprep.mubr.bf16.mxu0 %v583
      %766 = vmatmul.mubr.bf16.gmra.mrb[0].mxu0 %v582
      %v767 = vpop.f32.mrb[0].mxu0
      %v768 = vadd.f32 %v635, %v767
      %v769 = vpop.f32.mrb[0].mxu0
      %v770 = vpop.f32.mrb[0].mxu0
      %v771 = vadd.f32 %v635, %v770
      %v772 = vpop.f32.mrb[0].mxu0
      %773 = vmatprep.mubr.bf16.mxu0 %v585
      %774 = vmatmul.mubr.bf16.gmra.mrb[0].mxu0 %v584
      %v775 = vpop.f32.mrb[0].mxu0
      %v776 = vadd.f32 %v635, %v775
      %v777 = vpop.f32.mrb[0].mxu0
      %v778 = vpop.f32.mrb[0].mxu0
      %v779 = vadd.f32 %v635, %v778
      %v780 = vpop.f32.mrb[0].mxu0
      %781 = vmatprep.mubr.bf16.mxu0 %v587
      %782 = vmatmul.mubr.bf16.gmra.mrb[0].mxu0 %v586
      %v783 = vpop.f32.mrb[0].mxu0
      %v784 = vadd.f32 %v635, %v783
      %v785 = vpop.f32.mrb[0].mxu0
      %v786 = vpop.f32.mrb[0].mxu0
      %v787 = vadd.f32 %v635, %v786
      %v788 = vpop.f32.mrb[0].mxu0
      %789 = vmatprep.mubr.bf16.mxu0 %v589
      %790 = vmatmul.mubr.bf16.gmra.mrb[0].mxu0 %v588
      %v791 = vpop.f32.mrb[0].mxu0
      %v792 = vadd.f32 %v635, %v791
      %v793 = vpop.f32.mrb[0].mxu0
      %v794 = vpop.f32.mrb[0].mxu0
      %v795 = vadd.f32 %v635, %v794
      %v796 = vpop.f32.mrb[0].mxu0
      %797 = vmatprep.mubr.bf16.mxu0 %v591
      %798 = vmatmul.mubr.bf16.gmra.mrb[0].mxu0 %v590
      %v799 = vpop.f32.mrb[0].mxu0
      %v800 = vadd.f32 %v635, %v799
      %v801 = vpop.f32.mrb[0].mxu0
      %v802 = vpop.f32.mrb[0].mxu0
      %v803 = vadd.f32 %v635, %v802
      %v804 = vpop.f32.mrb[0].mxu0
      %805 = vmatprep.mubr.bf16.mxu0 %v593
      %806 = vmatmul.mubr.bf16.gmra.mrb[0].mxu0 %v592
      %v807 = vpop.f32.mrb[0].mxu0
      %v808 = vadd.f32 %v635, %v807
      %v809 = vpop.f32.mrb[0].mxu0
      %v810 = vpop.f32.mrb[0].mxu0
      %v811 = vadd.f32 %v635, %v810
      %v812 = vpop.f32.mrb[0].mxu0
      %813 = vmatprep.mubr.bf16.mxu0 %v595
      %814 = vmatmul.mubr.bf16.gmra.mrb[0].mxu0 %v594
      %v815 = vpop.f32.mrb[0].mxu0
      %v816 = vadd.f32 %v635, %v815
      %v817 = vpop.f32.mrb[0].mxu0
      %v818 = vpop.f32.mrb[0].mxu0
      %v819 = vadd.f32 %v635, %v818
      %v820 = vpop.f32.mrb[0].mxu0
      %821 = vmatprep.mubr.bf16.mxu0 %v597
      %822 = vmatmul.mubr.bf16.gmra.mrb[0].mxu0 %v596
      %v823 = vpop.f32.mrb[0].mxu0
      %v824 = vadd.f32 %v635, %v823
      %v825 = vpop.f32.mrb[0].mxu0
      %v826 = vpop.f32.mrb[0].mxu0
      %v827 = vadd.f32 %v635, %v826
      %v828 = vpop.f32.mrb[0].mxu0
      %829 = vdwg.mxu0
      %v830 = vmax.f32 %v768, 0.0
      %v831 = vmax.f32 %v771, 0.0
      %v832 = vmax.f32 %v776, 0.0
      %v833 = vmax.f32 %v779, 0.0
      %v834 = vmax.f32 %v784, 0.0
      %v835 = vmax.f32 %v787, 0.0
      %v836 = vmax.f32 %v792, 0.0
      %v837 = vmax.f32 %v795, 0.0
      %v838 = vmax.f32 %v800, 0.0
      %v839 = vmax.f32 %v803, 0.0
      %v840 = vmax.f32 %v808, 0.0
      %v841 = vmax.f32 %v811, 0.0
      %v842 = vmax.f32 %v816, 0.0
      %v843 = vmax.f32 %v819, 0.0
      %v844 = vmax.f32 %v824, 0.0
      %v845 = vmax.f32 %v827, 0.0
      %v846 = vld [vmem:[#allocation9] sm:$0xff]
      %v847 = vld [vmem:[#allocation9 + $0x8] sm:$0xff]
      %v848 = vld [vmem:[#allocation9 + $0x10] sm:$0xff]
      %v849 = vld [vmem:[#allocation9 + $0x18] sm:$0xff]
      %v850 = vld [vmem:[#allocation9 + $0x20] sm:$0xff]
      %v851 = vld [vmem:[#allocation9 + $0x28] sm:$0xff]
      %v852 = vld [vmem:[#allocation9 + $0x30] sm:$0xff]
      %v853 = vld [vmem:[#allocation9 + $0x38] sm:$0xff]
      %v854 = vld [vmem:[#allocation9 + $0x40] sm:$0xff]
      %v855 = vld [vmem:[#allocation9 + $0x48] sm:$0xff]
      %v856 = vld [vmem:[#allocation9 + $0x50] sm:$0xff]
      %v857 = vld [vmem:[#allocation9 + $0x58] sm:$0xff]
      %v858 = vld [vmem:[#allocation9 + $0x60] sm:$0xff]
      %v859 = vld [vmem:[#allocation9 + $0x68] sm:$0xff]
      %v860 = vld [vmem:[#allocation9 + $0x70] sm:$0xff]
      %v861 = vld [vmem:[#allocation9 + $0x78] sm:$0xff]
      %v862 = vmul.f32 %v830, %v846
      %v863 = vmul.f32 %v831, %v847
      %v864 = vmul.f32 %v832, %v848
      %v865 = vmul.f32 %v833, %v849
      %v866 = vmul.f32 %v834, %v850
      %v867 = vmul.f32 %v835, %v851
      %v868 = vmul.f32 %v836, %v852
      %v869 = vmul.f32 %v837, %v853
      %v870 = vmul.f32 %v838, %v854
      %v871 = vmul.f32 %v839, %v855
      %v872 = vmul.f32 %v840, %v856
      %v873 = vmul.f32 %v841, %v857
      %v874 = vmul.f32 %v842, %v858
      %v875 = vmul.f32 %v843, %v859
      %v876 = vmul.f32 %v844, %v860
      %v877 = vmul.f32 %v845, %v861
      %v878 = vpack.c.bf16 %v863, %v862
      %v879 = vpack.c.bf16 %v865, %v864
      %v880 = vpack.c.bf16 %v867, %v866
      %v881 = vpack.c.bf16 %v869, %v868
      %v882 = vpack.c.bf16 %v871, %v870
      %v883 = vpack.c.bf16 %v873, %v872
      %v884 = vpack.c.bf16 %v875, %v874
      %v885 = vpack.c.bf16 %v877, %v876
      %v894 = vunpack.c.l.b16 %v878
      %v895 = vunpack.c.h.b16 %v878
      %v896 = vunpack.c.l.b16 %v879
      %v897 = vunpack.c.h.b16 %v879
      %v898 = vunpack.c.l.b16 %v880
      %v899 = vunpack.c.h.b16 %v880
      %v900 = vunpack.c.l.b16 %v881
      %v901 = vunpack.c.h.b16 %v881
      %v902 = vunpack.c.l.b16 %v882
      %v903 = vunpack.c.h.b16 %v882
      %v904 = vunpack.c.l.b16 %v883
      %v905 = vunpack.c.h.b16 %v883
      %v906 = vunpack.c.l.b16 %v884
      %v907 = vunpack.c.h.b16 %v884
      %v908 = vunpack.c.l.b16 %v885
      %v909 = vunpack.c.h.b16 %v885
      %v910 = vpack.c.b16 %v894, %v894
      %v911 = vpack.c.b16 %v895, %v895
      %v912 = vpack.c.b16 %v896, %v896
      %v913 = vpack.c.b16 %v897, %v897
      %v914 = vpack.c.b16 %v898, %v898
      %v915 = vpack.c.b16 %v899, %v899
      %v916 = vpack.c.b16 %v900, %v900
      %v917 = vpack.c.b16 %v901, %v901
      %v918 = vpack.c.b16 %v902, %v902
      %v919 = vpack.c.b16 %v903, %v903
      %v920 = vpack.c.b16 %v904, %v904
      %v921 = vpack.c.b16 %v905, %v905
      %v922 = vpack.c.b16 %v906, %v906
      %v923 = vpack.c.b16 %v907, %v907
      %v924 = vpack.c.b16 %v908, %v908
      %v925 = vpack.c.b16 %v909, %v909
      %942 = vst [vmem:[#allocation10] sm:$0xf] %v910
      %943 = vst [vmem:[#allocation10 + $0x4] sm:$0xf] %v911
      %944 = vst [vmem:[#allocation10 + $0x8] sm:$0xf] %v912
      %945 = vst [vmem:[#allocation10 + $0xc] sm:$0xf] %v913
      %946 = vst [vmem:[#allocation10 + $0x10] sm:$0xf] %v914
      %947 = vst [vmem:[#allocation10 + $0x14] sm:$0xf] %v915
      %948 = vst [vmem:[#allocation10 + $0x18] sm:$0xf] %v916
      %949 = vst [vmem:[#allocation10 + $0x1c] sm:$0xf] %v917
      %950 = vst [vmem:[#allocation10 + $0x20] sm:$0xf] %v918
      %951 = vst [vmem:[#allocation10 + $0x24] sm:$0xf] %v919
      %952 = vst [vmem:[#allocation10 + $0x28] sm:$0xf] %v920
      %953 = vst [vmem:[#allocation10 + $0x2c] sm:$0xf] %v921
      %954 = vst [vmem:[#allocation10 + $0x30] sm:$0xf] %v922
      %955 = vst [vmem:[#allocation10 + $0x34] sm:$0xf] %v923
      %956 = vst [vmem:[#allocation10 + $0x38] sm:$0xf] %v924
      %957 = vst [vmem:[#allocation10 + $0x3c] sm:$0xf] %v925
    $region49: #{tpu_custom_call.1} parent=1 // pred_fallthru
      _
    // Predicated region
    $region50: #{tpu_custom_call.1} parent=1 // pred_check
      _
    $region51: #{tpu_custom_call.1} parent=1 // pred_check_branch
      %959 = sbr.rel (0) target = $region53
    $region52: #{tpu_custom_call.1} parent=1 // pred_region
      %s961 = ssub.s32 1024, 1024
      %962 = vsyncadd [#allocation6], %s961
      %s963 = sshll.u32 [#allocation10], 4
      %s964 = int_to_ptr.vmem [resolvable:$true] %s963
      %969 = dma.vmem_to_hbm [thread:$0]  %s964, 1024, %s6, [#allocation6], 64, 64, 4
    $region53: #{tpu_custom_call.1} parent=1 // pred_fallthru
      _
    // Predicated region
    $region54: #{tpu_custom_call.1} parent=1 // pred_check
      _
    $region55: #{tpu_custom_call.1} parent=1 // pred_check_branch
      %971 = sbr.rel (0) target = $region57
    $region56: #{tpu_custom_call.1} parent=1 // pred_region
      %972 = dma.done [#allocation6], 1024
    $region57: #{tpu_custom_call.1} parent=1 // pred_fallthru
      _
    %973 = vsyncpa [#allocation5], 1
    %974 = vsyncpa [#allocation8], 1
    %975 = vsyncpa [#allocation6], 1

</llo_original>
